<compile_context>
chip_gen: v7x
topology: tpu7x:2x2x1
jax: 0.10.0
libtpu: 0.0.40
codegen_flags: <defaults>
</compile_context>

<pallas_src>
import jax
import jax.numpy as jnp
from jax.experimental import pallas as pl
from jax.experimental.pallas import tpu as pltpu


def _round_up(n, m):
    return ((n + m - 1) // m) * m


def _mlp_kernel(x_ref, w1_ref, b1_ref, w2_ref, b2_ref, out_ref):
    # Cast the streamed x tile to the weight dtype (bf16) in VMEM: the HBM
    # read stays one pass at the caller's dtype, the MXU gets bf16 operands.
    xb = x_ref[...].astype(w1_ref.dtype)
    # fc1: (TB, I) @ (I, Hp) -> f32 accum, bias + ReLU in f32.
    h = jnp.dot(xb, w1_ref[...], preferred_element_type=jnp.float32)
    h = jnp.maximum(h + b1_ref[...], 0.0)
    # fc2: (TB, Hp) @ (Hp, C) -> f32 accum, bias in f32, store unpadded C.
    y = jnp.dot(h.astype(w2_ref.dtype), w2_ref[...],
                preferred_element_type=jnp.float32)
    out_ref[...] = (y + b2_ref[...]).astype(out_ref.dtype)


def prepare_params(w1, b1, w2, b2, *, weight_dtype=jnp.bfloat16):
    """One-time parameter prep (transpose + hidden-pad + bf16 cast).

    Not in the per-call hot path.
    w1: (H, I) PyTorch layout, b1: (H,), w2: (C, H), b2: (C,)
    """
    H, I = w1.shape
    C = w2.shape[0]
    H_pad = _round_up(H, 128)   # lane dim of fc1 output / contraction of fc2

    w1_p = jnp.zeros((I, H_pad), weight_dtype).at[:, :H].set(
        w1.T.astype(weight_dtype))
    b1_p = jnp.zeros((1, H_pad), jnp.float32).at[0, :H].set(
        b1.astype(jnp.float32))
    w2_p = jnp.zeros((H_pad, C), weight_dtype).at[:H, :].set(
        w2.T.astype(weight_dtype))
    b2_p = b2.astype(jnp.float32).reshape(1, C)

    meta = dict(I=I, H=H, C=C, H_pad=H_pad)
    return (w1_p, b1_p, w2_p, b2_p), meta


@jax.jit
def _forward_impl(x, w1_p, b1_p, w2_p, b2_p):
    B, I = x.shape
    I_w, H_pad = w1_p.shape
    C = w2_p.shape[1]
    assert I == I_w, "input feature dim mismatch with prepared weights"

    # --- Batch tile selection ---------------------------------------------
    # Big tiles (up to 1024 rows) amortize per-grid-step overhead; full-extent
    # batch block when B <= 1024 (exempt from the /8 rule, no padding).
    TB = B if B <= 1024 else 1024
    # v7x megacore: prefer >= 2 grid steps so the "parallel" batch axis can
    # shard across both TensorCores; don't shrink tiles below ~256 rows.
    while TB >= 512 and pl.cdiv(B, TB) < 2:
        TB = _round_up(TB // 2, 8)
    grid = (pl.cdiv(B, TB),)

    # --- Explicit VMEM budget (double-buffered tiles + resident weights) ---
    x_bytes = TB * I * x.dtype.itemsize
    out_bytes = TB * C * x.dtype.itemsize
    w_bytes = sum(int(a.size) * a.dtype.itemsize
                  for a in (w1_p, b1_p, w2_p, b2_p))
    vmem_need = 2 * (x_bytes + out_bytes + w_bytes)
    vmem_limit = int(max(8 * 2**20, min(2 * vmem_need, 64 * 2**20)))

    return pl.pallas_call(
        _mlp_kernel,
        out_shape=jax.ShapeDtypeStruct((B, C), x.dtype),   # unpadded: no slice
        grid=grid,
        in_specs=[
            pl.BlockSpec((TB, I), lambda i: (i, 0)),        # x: streamed
            pl.BlockSpec((I, H_pad), lambda i: (0, 0)),     # w1: VMEM-resident
            pl.BlockSpec((1, H_pad), lambda i: (0, 0)),     # b1
            pl.BlockSpec((H_pad, C), lambda i: (0, 0)),     # w2
            pl.BlockSpec((1, C), lambda i: (0, 0)),         # b2
        ],
        out_specs=pl.BlockSpec((TB, C), lambda i: (i, 0)),  # unpadded C store
        compiler_params=pltpu.CompilerParams(
            dimension_semantics=("parallel",),
            vmem_limit_bytes=vmem_limit),
    )(x, w1_p, b1_p, w2_p, b2_p)


def neural_net_forward(x, prepared_params, meta=None):
    """Forward pass: relu(x @ W1^T + b1) @ W2^T + b2 (PyTorch semantics)."""
    del meta  # all shape info is carried by the prepared params
    w1_p, b1_p, w2_p, b2_p = prepared_params
    return _forward_impl(x, w1_p, b1_p, w2_p, b2_p)


def _init_linear(key, out_features, in_features):
    """Deterministic init mimicking nn.Linear default (uniform +-1/sqrt(in))."""
    kw, kb = jax.random.split(key)
    bound = 1.0 / jnp.sqrt(jnp.float32(in_features))
    w = jax.random.uniform(kw, (out_features, in_features),
                           minval=-bound, maxval=bound, dtype=jnp.float32)
    b = jax.random.uniform(kb, (out_features,),
                           minval=-bound, maxval=bound, dtype=jnp.float32)
    return w, b


if __name__ == "__main__":
    # Small, module-consistent shapes: batch=8, input_size=64, hidden=32, classes=8
    batch, input_size, hidden_size, num_classes = 8, 64, 32, 8

    key = jax.random.PRNGKey(0)
    kx, k1, k2 = jax.random.split(key, 3)

    x = jax.random.normal(kx, (batch, input_size), dtype=jnp.float32)
    w1, b1 = _init_linear(k1, hidden_size, input_size)
    w2, b2 = _init_linear(k2, num_classes, hidden_size)

    # One-time param prep (transpose + pad + bf16 cast) -- outside the hot path.
    params, meta = prepare_params(w1, b1, w2, b2)

    out = neural_net_forward(x, params, meta)
    out = jax.block_until_ready(out)

    # Reference matching the kernel's mixed precision: bf16 matmul operands,
    # f32 accumulation / bias / ReLU (PyTorch fc1 -> relu -> fc2 semantics).
    hp = jax.lax.Precision.HIGHEST
    xb = x.astype(jnp.bfloat16).astype(jnp.float32)
    w1b = w1.astype(jnp.bfloat16).astype(jnp.float32)
    w2b = w2.astype(jnp.bfloat16).astype(jnp.float32)
    h_ref = jnp.maximum(jnp.dot(xb, w1b.T, precision=hp) + b1, 0.0)
    ref = jnp.dot(h_ref.astype(jnp.bfloat16).astype(jnp.float32), w2b.T,
                  precision=hp) + b2

    assert out.shape == (batch, num_classes)
    assert jnp.allclose(out, ref, atol=1e-4, rtol=1e-4), float(
        jnp.max(jnp.abs(out - ref)))

    print("KERNEL_OK")
</pallas_src>

<mosaic_0001>
module attributes {stable_mosaic.version = 11 : i64} {
  func.func @_mlp_kernel(%arg0: i32, %arg1: memref<8x64xf32, #tpu.memory_space<vmem>>, %arg2: memref<64x128xbf16, #tpu.memory_space<vmem>>, %arg3: memref<1x128xf32, #tpu.memory_space<vmem>>, %arg4: memref<128x8xbf16, #tpu.memory_space<vmem>>, %arg5: memref<1x8xf32, #tpu.memory_space<vmem>>, %arg6: memref<8x8xf32, #tpu.memory_space<vmem>>) attributes {dimension_semantics = [#tpu.dimension_semantics<parallel>], iteration_bounds = array<i64: 1>, scalar_prefetch = 0 : i64, scratch_operands = 0 : i64, tpu.core_type = #tpu.core_type<tc>, window_params = [{transform_indices = @transform_0, window_bounds = array<i64: 8, 64>}, {pipeline_mode = #tpu.pipeline_mode<synchronous>, transform_indices = @transform_1, window_bounds = array<i64: 64, 128>}, {pipeline_mode = #tpu.pipeline_mode<synchronous>, transform_indices = @transform_2, window_bounds = array<i64: 1, 128>}, {pipeline_mode = #tpu.pipeline_mode<synchronous>, transform_indices = @transform_3, window_bounds = array<i64: 128, 8>}, {pipeline_mode = #tpu.pipeline_mode<synchronous>, transform_indices = @transform_4, window_bounds = array<i64: 1, 8>}, {transform_indices = @transform_5, window_bounds = array<i64: 8, 8>}]} {
    %c0 = arith.constant 0 : index
    %c0_0 = arith.constant 0 : index
    %0 = vector.load %arg1[%c0, %c0_0] : memref<8x64xf32, #tpu.memory_space<vmem>>, vector<8x64xf32>
    %1 = arith.truncf %0 : vector<8x64xf32> to vector<8x64xbf16>
    %c0_1 = arith.constant 0 : index
    %c0_2 = arith.constant 0 : index
    %2 = vector.load %arg2[%c0_1, %c0_2] : memref<64x128xbf16, #tpu.memory_space<vmem>>, vector<64x128xbf16>
    %cst = arith.constant dense<0.000000e+00> : vector<8x128xf32>
    %3 = tpu.matmul %1, %2, %cst {dimension_numbers = #tpu.dot_dimension_numbers<[1], [0], [0], [1], [0, 0, 1, 1], [], []>} : vector<8x64xbf16>, vector<64x128xbf16>, vector<8x128xf32> -> vector<8x128xf32>
    %c0_3 = arith.constant 0 : index
    %c0_4 = arith.constant 0 : index
    %4 = vector.load %arg3[%c0_3, %c0_4] : memref<1x128xf32, #tpu.memory_space<vmem>>, vector<1x128xf32>
    %5 = vector.broadcast %4 : vector<1x128xf32> to vector<8x128xf32>
    %6 = arith.addf %3, %5 : vector<8x128xf32>
    %cst_5 = arith.constant 0.000000e+00 : f32
    %7 = vector.broadcast %cst_5 : f32 to vector<8x128xf32>
    %8 = arith.maximumf %6, %7 : vector<8x128xf32>
    %9 = arith.truncf %8 : vector<8x128xf32> to vector<8x128xbf16>
    %c0_6 = arith.constant 0 : index
    %c0_7 = arith.constant 0 : index
    %10 = vector.load %arg4[%c0_6, %c0_7] : memref<128x8xbf16, #tpu.memory_space<vmem>>, vector<128x8xbf16>
    %cst_8 = arith.constant dense<0.000000e+00> : vector<8x8xf32>
    %11 = tpu.matmul %9, %10, %cst_8 {dimension_numbers = #tpu.dot_dimension_numbers<[1], [0], [0], [1], [0, 0, 1, 1], [], []>} : vector<8x128xbf16>, vector<128x8xbf16>, vector<8x8xf32> -> vector<8x8xf32>
    %c0_9 = arith.constant 0 : index
    %c0_10 = arith.constant 0 : index
    %12 = vector.load %arg5[%c0_9, %c0_10] : memref<1x8xf32, #tpu.memory_space<vmem>>, vector<1x8xf32>
    %13 = vector.broadcast %12 : vector<1x8xf32> to vector<8x8xf32>
    %14 = arith.addf %11, %13 : vector<8x8xf32>
    %c0_11 = arith.constant 0 : index
    %c0_12 = arith.constant 0 : index
    %15 = vector.load %arg6[%c0_11, %c0_12] : memref<8x8xf32, #tpu.memory_space<vmem>>, vector<8x8xf32>
    tpu.vector_store %arg6[%c0_11, %c0_12], %14 {strides = array<i32>} : memref<8x8xf32, #tpu.memory_space<vmem>>, vector<8x8xf32>,
    return
  }
  func.func @transform_0(%arg0: i32) -> (i32, i32) {
    %c0_i32 = arith.constant 0 : i32
    %c0_i32_0 = arith.constant 0 : i32
    return %arg0, %c0_i32 : i32, i32
  }
  func.func @transform_1(%arg0: i32) -> (i32, i32) {
    %c0_i32 = arith.constant 0 : i32
    %c0_i32_0 = arith.constant 0 : i32
    %c0_i32_1 = arith.constant 0 : i32
    return %c0_i32, %c0_i32_0 : i32, i32
  }
  func.func @transform_2(%arg0: i32) -> (i32, i32) {
    %c0_i32 = arith.constant 0 : i32
    %c0_i32_0 = arith.constant 0 : i32
    %c0_i32_1 = arith.constant 0 : i32
    return %c0_i32, %c0_i32_0 : i32, i32
  }
  func.func @transform_3(%arg0: i32) -> (i32, i32) {
    %c0_i32 = arith.constant 0 : i32
    %c0_i32_0 = arith.constant 0 : i32
    %c0_i32_1 = arith.constant 0 : i32
    return %c0_i32, %c0_i32_0 : i32, i32
  }
  func.func @transform_4(%arg0: i32) -> (i32, i32) {
    %c0_i32 = arith.constant 0 : i32
    %c0_i32_0 = arith.constant 0 : i32
    %c0_i32_1 = arith.constant 0 : i32
    return %c0_i32, %c0_i32_0 : i32, i32
  }
  func.func @transform_5(%arg0: i32) -> (i32, i32) {
    %c0_i32 = arith.constant 0 : i32
    %c0_i32_0 = arith.constant 0 : i32
    return %arg0, %c0_i32 : i32, i32
  }
}

</mosaic_0001>

<llo_original>
// kernel: _forward_impl.1
$region0: #{_forward_impl.1}
  #allocation0 [shape = 'u32[]', space=smem, size = 0x4, offset = 0x4, fixed_abs, tag = 'smem constant byte address 0x4 - core index']
  #allocation1 [shape = 'u32[144,128]{1,0:T(1,128)}', space=vmem, size = 0x12000, scoped, tag = 'internal scratch']
  %s0 = inlined_call_operand.vmem [shape: f32[8,64], index: 0, kind: input, shape index: {}]
  %s1 = inlined_call_operand.vmem [shape: bf16[64,128], index: 1, kind: input, shape index: {}]
  %s2 = inlined_call_operand.vmem [shape: f32[1,128], index: 2, kind: input, shape index: {}]
  %s3 = inlined_call_operand.vmem [shape: bf16[128,8], index: 3, kind: input, shape index: {}]
  %s4 = inlined_call_operand.vmem [shape: f32[1,8], index: 4, kind: input, shape index: {}]
  %s5 = inlined_call_operand.hbm [shape: f32[8,8], index: 5, kind: output, shape index: {}]
  %s6 = sld [smem:[#allocation0]]
  $region30: #{_forward_impl.1} parent=0
    _
  %s8 = ssub.s32 1, %s6
  %s9 = scalar_select 0, %s8, %s6
  $region1: #{_forward_impl.1} parent=0
    #allocation2 [shape = 'u8[4096]{0}', space=vmem, size = 0x1000, scoped, tag = 'output window, operand 0, single buffered']
    #allocation3 [shape = 's32[1]{0}', space=sflag, size = 0x4, scoped, tag = 'scoped memory for _forward_impl.1']
    %10 = vsyncpa [#allocation3], 0
    // Predicated region
    $region2: #{_forward_impl.1} parent=1 // pred_check
      _
    $region3: #{_forward_impl.1} parent=1 // pred_check_branch
      %12 = sbr.rel (0) target = $region5
    $region4: #{_forward_impl.1} parent=1 // pred_region
      _
    $region5: #{_forward_impl.1} parent=1 // pred_fallthru
      _
    // Predicated region
    $region6: #{_forward_impl.1} parent=1 // pred_check
      _
    $region7: #{_forward_impl.1} parent=1 // pred_check_branch
      %14 = sbr.rel (0) target = $region9
    $region8: #{_forward_impl.1} parent=1 // pred_region
      _
    $region9: #{_forward_impl.1} parent=1 // pred_fallthru
      _
    // Predicated region
    $region10: #{_forward_impl.1} parent=1 // pred_check
      _
    $region11: #{_forward_impl.1} parent=1 // pred_check_branch
      %16 = sbr.rel (0) target = $region13
    $region12: #{_forward_impl.1} parent=1 // pred_region
      _
    $region13: #{_forward_impl.1} parent=1 // pred_fallthru
      _
    // Predicated region
    $region14: #{_forward_impl.1} parent=1 // pred_check
      _
    $region15: #{_forward_impl.1} parent=1 // pred_check_branch
      %18 = sbr.rel (0) target = $region17
    $region16: #{_forward_impl.1} parent=1 // pred_region
      _
    $region17: #{_forward_impl.1} parent=1 // pred_fallthru
      _
    // Predicated region
    $region18: #{_forward_impl.1} parent=1 // pred_check
      _
    $region19: #{_forward_impl.1} parent=1 // pred_check_branch
      %20 = sbr.rel (0) target = $region21
    $region20: #{_forward_impl.1} parent=1 // pred_region
      _
    $region21: #{_forward_impl.1} parent=1 // pred_fallthru
      _
    %v22 = vld [vmem:[%s0] sm:$0xff]
    %v23 = vpack.c.bf16 %v22, %v22
    %v24 = vld [vmem:[%s1] sm:$0xf]
    %v25 = vld [vmem:[%s1 + $0x4] sm:$0xf]
    %v26 = vld [vmem:[%s1 + $0x8] sm:$0xf]
    %v27 = vld [vmem:[%s1 + $0xc] sm:$0xf]
    %v28 = vld [vmem:[%s1 + $0x10] sm:$0xf]
    %v29 = vld [vmem:[%s1 + $0x14] sm:$0xf]
    %v30 = vld [vmem:[%s1 + $0x18] sm:$0xf]
    %v31 = vld [vmem:[%s1 + $0x1c] sm:$0xf]
    %v32 = vld [vmem:[%s2] sm:$0x1]
    %v34 = vlaneseq
    %v35 = vshrl.u32 %v34, 7
    %v36 = vsub.s32 0, %v35
    %v37 = vrot.slane %v32, %v36
    %v47 = vunpack.c.l.b16 %v24
    %v48 = vunpack.c.l.b16 %v25
    %v49 = vunpack.c.l.b16 %v26
    %v50 = vunpack.c.l.b16 %v27
    %v51 = vunpack.c.l.b16 %v28
    %v52 = vunpack.c.l.b16 %v29
    %v53 = vunpack.c.l.b16 %v30
    %v54 = vunpack.c.l.b16 %v31
    %v55 = vpack.c.b16 %v48, %v47
    %v56 = vpack.c.b16 %v50, %v49
    %v57 = vpack.c.b16 %v52, %v51
    %v58 = vpack.c.b16 %v54, %v53
    %vm63 = vcmask 523264
    %v65 = vsel %vm63, %v23, 0
    %67 = vmatprep.subr.bf16.mxu0 0
    %68 = vmatpush1.bf16.msra.mxu0 %v55
    %69 = vmatprep.subr.bf16.mxu0 0
    %70 = vmatpush1.bf16.msra.mxu0 %v56
    %71 = vmatprep.subr.bf16.mxu0 0
    %72 = vmatpush1.bf16.msra.mxu0 %v57
    %73 = vmatprep.subr.bf16.mxu0 0
    %74 = vmatpush1.bf16.msra.mxu0 %v58
    %75 = vmatprep.subr.bf16.mxu0 0
    %76 = vmatpush1.bf16.msra.mxu0 0
    %77 = vmatprep.subr.bf16.mxu0 0
    %78 = vmatpush1.bf16.msra.mxu0 0
    %79 = vmatprep.subr.bf16.mxu0 0
    %80 = vmatpush1.bf16.msra.mxu0 0
    %81 = vmatprep.subr.bf16.mxu0 0
    %82 = vmatpush1.bf16.msra.mxu0 0
    %83 = vmatprep.subr.bf16.mxu0 0
    %84 = vmatpush1.bf16.msra.mxu0 0
    %85 = vmatprep.subr.bf16.mxu0 0
    %86 = vmatpush1.bf16.msra.mxu0 0
    %87 = vmatprep.subr.bf16.mxu0 0
    %88 = vmatpush1.bf16.msra.mxu0 0
    %89 = vmatprep.subr.bf16.mxu0 0
    %90 = vmatpush1.bf16.msra.mxu0 0
    %91 = vmatprep.subr.bf16.mxu0 0
    %92 = vmatpush1.bf16.msra.mxu0 0
    %93 = vmatprep.subr.bf16.mxu0 0
    %94 = vmatpush1.bf16.msra.mxu0 0
    %95 = vmatprep.subr.bf16.mxu0 0
    %96 = vmatpush1.bf16.msra.mxu0 0
    %97 = vmatprep.subr.bf16.mxu0 0
    %98 = vmatpush1.bf16.msra.mxu0 0
    %99 = vmatprep.mubr.bf16.mxu0 0
    %100 = vmatmul.mubr.bf16.gmra.mrb[0].mxu0 %v65
    %v101 = vpop.f32.mrb[0].mxu0
    %v102 = vadd.f32 %v37, %v101
    %v103 = vpop.f32.mrb[0].mxu0
    %v104 = vpop.f32.mrb[0].mxu0
    %v105 = vpop.f32.mrb[0].mxu0
    %106 = vdwg.mxu0
    %v107 = vmax.f32 %v102, 0.0
    %v108 = vpack.c.bf16 %v107, %v107
    %v109 = vld [vmem:[%s3] sm:$0xf]
    %v110 = vld [vmem:[%s3 + $0x4] sm:$0xf]
    %v111 = vld [vmem:[%s3 + $0x8] sm:$0xf]
    %v112 = vld [vmem:[%s3 + $0xc] sm:$0xf]
    %v113 = vld [vmem:[%s3 + $0x10] sm:$0xf]
    %v114 = vld [vmem:[%s3 + $0x14] sm:$0xf]
    %v115 = vld [vmem:[%s3 + $0x18] sm:$0xf]
    %v116 = vld [vmem:[%s3 + $0x1c] sm:$0xf]
    %v117 = vld [vmem:[%s3 + $0x20] sm:$0xf]
    %v118 = vld [vmem:[%s3 + $0x24] sm:$0xf]
    %v119 = vld [vmem:[%s3 + $0x28] sm:$0xf]
    %v120 = vld [vmem:[%s3 + $0x2c] sm:$0xf]
    %v121 = vld [vmem:[%s3 + $0x30] sm:$0xf]
    %v122 = vld [vmem:[%s3 + $0x34] sm:$0xf]
    %v123 = vld [vmem:[%s3 + $0x38] sm:$0xf]
    %v124 = vld [vmem:[%s3 + $0x3c] sm:$0xf]
    %v125 = vld [vmem:[%s4] sm:$0x1]
    %v127 = vlaneseq
    %v128 = vshrl.u32 %v127, 7
    %v129 = vsub.s32 0, %v128
    %v130 = vrot.slane %v125, %v129
    %v148 = vunpack.c.l.b16 %v109
    %v149 = vunpack.c.l.b16 %v110
    %v150 = vunpack.c.l.b16 %v111
    %v151 = vunpack.c.l.b16 %v112
    %v152 = vunpack.c.l.b16 %v113
    %v153 = vunpack.c.l.b16 %v114
    %v154 = vunpack.c.l.b16 %v115
    %v155 = vunpack.c.l.b16 %v116
    %v156 = vunpack.c.l.b16 %v117
    %v157 = vunpack.c.l.b16 %v118
    %v158 = vunpack.c.l.b16 %v119
    %v159 = vunpack.c.l.b16 %v120
    %v160 = vunpack.c.l.b16 %v121
    %v161 = vunpack.c.l.b16 %v122
    %v162 = vunpack.c.l.b16 %v123
    %v163 = vunpack.c.l.b16 %v124
    %v164 = vpack.c.b16 %v149, %v148
    %v165 = vpack.c.b16 %v151, %v150
    %v166 = vpack.c.b16 %v153, %v152
    %v167 = vpack.c.b16 %v155, %v154
    %v168 = vpack.c.b16 %v157, %v156
    %v169 = vpack.c.b16 %v159, %v158
    %v170 = vpack.c.b16 %v161, %v160
    %v171 = vpack.c.b16 %v163, %v162
    %180 = vmatprep.subr.bf16.mxu0 0
    %181 = vmatpush1.bf16.msra.mxu0 %v164
    %182 = vmatprep.subr.bf16.mxu0 0
    %183 = vmatpush1.bf16.msra.mxu0 %v165
    %184 = vmatprep.subr.bf16.mxu0 0
    %185 = vmatpush1.bf16.msra.mxu0 %v166
    %186 = vmatprep.subr.bf16.mxu0 0
    %187 = vmatpush1.bf16.msra.mxu0 %v167
    %188 = vmatprep.subr.bf16.mxu0 0
    %189 = vmatpush1.bf16.msra.mxu0 %v168
    %190 = vmatprep.subr.bf16.mxu0 0
    %191 = vmatpush1.bf16.msra.mxu0 %v169
    %192 = vmatprep.subr.bf16.mxu0 0
    %193 = vmatpush1.bf16.msra.mxu0 %v170
    %194 = vmatprep.subr.bf16.mxu0 0
    %195 = vmatpush1.bf16.msra.mxu0 %v171
    %196 = vmatprep.subr.bf16.mxu0 0
    %197 = vmatpush1.bf16.msra.mxu0 0
    %198 = vmatprep.subr.bf16.mxu0 0
    %199 = vmatpush1.bf16.msra.mxu0 0
    %200 = vmatprep.subr.bf16.mxu0 0
    %201 = vmatpush1.bf16.msra.mxu0 0
    %202 = vmatprep.subr.bf16.mxu0 0
    %203 = vmatpush1.bf16.msra.mxu0 0
    %204 = vmatprep.subr.bf16.mxu0 0
    %205 = vmatpush1.bf16.msra.mxu0 0
    %206 = vmatprep.subr.bf16.mxu0 0
    %207 = vmatpush1.bf16.msra.mxu0 0
    %208 = vmatprep.subr.bf16.mxu0 0
    %209 = vmatpush1.bf16.msra.mxu0 0
    %210 = vmatprep.subr.bf16.mxu0 0
    %211 = vmatpush1.bf16.msra.mxu0 0
    %212 = vmatprep.mubr.bf16.mxu0 0
    %213 = vmatmul.mubr.bf16.gmra.mrb[0].mxu0 %v108
    %v214 = vpop.f32.mrb[0].mxu0
    %v215 = vadd.f32 %v130, %v214
    %v216 = vpop.f32.mrb[0].mxu0
    %v217 = vpop.f32.mrb[0].mxu0
    %v218 = vpop.f32.mrb[0].mxu0
    %219 = vdwg.mxu0
    %vm220 = vcmask 64512
    %221 = vst.msk [vmem:[#allocation2] sm:$0xff] %vm220, %v215
    // Predicated region
    $region22: #{_forward_impl.1} parent=1 // pred_check
      _
    $region23: #{_forward_impl.1} parent=1 // pred_check_branch
      %223 = sbr.rel (0) target = $region25
    $region24: #{_forward_impl.1} parent=1 // pred_region
      %s225 = ssub.s32 128, 128
      %226 = vsyncadd [#allocation3], %s225
      %s228 = sshll.u32 [#allocation2], 4
      %s229 = int_to_ptr.vmem [resolvable:$true] %s228
      %231 = dma.vmem_to_hbm [thread:$0]  %s229, 128, %s5, [#allocation3]
    $region25: #{_forward_impl.1} parent=1 // pred_fallthru
      _
    // Predicated region
    $region26: #{_forward_impl.1} parent=1 // pred_check
      _
    $region27: #{_forward_impl.1} parent=1 // pred_check_branch
      %233 = sbr.rel (0) target = $region29
    $region28: #{_forward_impl.1} parent=1 // pred_region
      %234 = dma.done [#allocation3], 128
    $region29: #{_forward_impl.1} parent=1 // pred_fallthru
      _
    %235 = vsyncpa [#allocation3], 1

</llo_original>
